<compile_context>
chip_gen: v7x
topology: tpu7x:2x2x1
jax: 0.10.0
libtpu: 0.0.40
codegen_flags: <defaults>
</compile_context>

<pallas_src>
import functools

import jax
import jax.numpy as jnp
from jax import lax
from jax.experimental import pallas as pl
from jax.experimental.pallas import tpu as pltpu


# ----------------------------------------------------------------------------
# Fused SoftParser kernel
# ----------------------------------------------------------------------------

def _soft_parser_kernel(emb_ref, wx_ref, bx_ref, whh_ref, fcw_ref, fcb_ref,
                        o_ref,
                        gates_ref, lf_ref, lb_ref,
                        *, seq_len, batch, hidden):
    S, Bt, H = seq_len, batch, hidden
    E = emb_ref.shape[-1]
    G = 8 * H          # gates for both directions, interleaved per gate
    H2 = 2 * H         # combined hidden width  [h_fwd | h_bwd]

    embv = emb_ref[...]                                      # (S, Bt, E) bf16, one load

    # ---- 1. input projection for both directions: one MXU matmul (bf16 in, f32 acc) ----
    emb2 = embv.reshape(S * Bt, E)                           # free view (Bt % 8 == 0)
    gx = jnp.dot(emb2, wx_ref[...], preferred_element_type=jnp.float32) + bx_ref[...]
    gates_ref[...] = gx.reshape(S, Bt, G)

    # ---- 2. hoisted direction select (parallel pre-pass, off the serial chain) ----
    # interleaved gate columns: [i_f i_b | f_f f_b | g_f g_b | o_f o_b]; forward
    # columns keep natural seq order, backward columns are swapped in place to seq
    # position S-1-t so the recurrence does a single gates_ref[t] read per step.
    col = lax.broadcasted_iota(jnp.int32, (Bt, G), 1)
    fwd_cols = (col % H2) < H

    def preselect(t, carry):
        rt = S - 1 - t
        a = gates_ref[t]
        b = gates_ref[rt]
        gates_ref[t] = jnp.where(fwd_cols, a, b)
        gates_ref[rt] = jnp.where(fwd_cols, b, a)
        return carry

    lax.fori_loop(0, (S + 1) // 2, preselect, 0, unroll=True)

    # ---- 3. fused bidirectional recurrence; h/c live in vregs (fori_loop carry) ----
    fcw_f = fcw_ref[:, :H]                                   # (1, H), hoisted
    fcw_b = fcw_ref[:, H:]

    def step(t, carry):
        h, c = carry
        rt = S - 1 - t
        gates = gates_ref[t] + jnp.dot(h.astype(jnp.bfloat16), whh_ref[...],
                                       preferred_element_type=jnp.float32)
        i_g = jax.nn.sigmoid(gates[:, 0 * H2:1 * H2])
        f_g = jax.nn.sigmoid(gates[:, 1 * H2:2 * H2])
        g_g = jnp.tanh(gates[:, 2 * H2:3 * H2])
        o_g = jax.nn.sigmoid(gates[:, 3 * H2:4 * H2])
        c = f_g * c + i_g * g_g
        h = o_g * jnp.tanh(c)
        # attention fc folded into the loop: per-direction logit contributions.
        lf_ref[t] = jnp.sum(h[:, :H] * fcw_f, axis=-1, keepdims=True)   # fwd, pos t
        lb_ref[rt] = jnp.sum(h[:, H:] * fcw_b, axis=-1, keepdims=True)  # bwd, pos S-1-t
        return h, c

    h0 = jnp.zeros((Bt, H2), jnp.float32)
    c0 = jnp.zeros((Bt, H2), jnp.float32)
    lax.fori_loop(0, S, step, (h0, c0), unroll=2)

    # ---- 4. softmax(dim=1) + weighted sum over embedded tokens, all in VMEM ----
    logits = lf_ref[...] + lb_ref[...] + fcb_ref[0]          # (S, Bt, 1)
    m = jnp.max(logits, axis=1, keepdims=True)
    e = jnp.exp(logits - m)
    attn = e * pl.reciprocal(jnp.sum(e, axis=1, keepdims=True), approx=True)
    o_ref[...] = jnp.sum(embv.astype(jnp.float32) * attn, axis=1)        # (S, E)


def _pack_bilstm(p):
    """Pack per-direction LSTM weights into fused, gate-interleaved matrices.

    Column layout of the 8H gate axis: [i_f i_b | f_f f_b | g_f g_b | o_f o_b],
    so a 2H-wide slice per gate lines up with the combined state [h_fwd | h_bwd].
    Matmul operands are returned in bf16 (f32 accumulation happens in-kernel).
    """
    H = p["w_hh_f"].shape[1]

    def interleave_cols(w_f, w_b):
        # w_f, w_b: (4H, X) with row chunks [i, f, g, o]  ->  (X, 8H)
        chunks = []
        for k in range(4):
            chunks.append(w_f[k * H:(k + 1) * H].T)
            chunks.append(w_b[k * H:(k + 1) * H].T)
        return jnp.concatenate(chunks, axis=1)

    wx = interleave_cols(p["w_ih_f"], p["w_ih_b"]).astype(jnp.bfloat16)  # (E, 8H)
    bx = interleave_cols((p["b_ih_f"] + p["b_hh_f"])[:, None],
                         (p["b_ih_b"] + p["b_hh_b"])[:, None])           # (1, 8H) f32
    # block-diagonal recurrent weights: h_fwd rows feed only fwd gate columns,
    # h_bwd rows feed only bwd gate columns.
    whh_f = interleave_cols(p["w_hh_f"], jnp.zeros_like(p["w_hh_b"]))    # (H, 8H)
    whh_b = interleave_cols(jnp.zeros_like(p["w_hh_f"]), p["w_hh_b"])    # (H, 8H)
    whh = jnp.concatenate([whh_f, whh_b], axis=0).astype(jnp.bfloat16)   # (2H, 8H)
    return wx, bx, whh


def soft_parser_forward(params, tokens):
    """SoftParser.forward(x) with x = tokens of shape (B, T) int32."""
    emb = params["embed"][tokens].astype(jnp.bfloat16)   # (S=B, Bt=T, E) gather glue (XLA)
    S, Bt, E = emb.shape
    H = params["w_hh_f"].shape[1]

    wx, bx, whh = _pack_bilstm(params)
    fcw = params["fc_w"].reshape(1, 2 * H).astype(jnp.float32)
    fcb = params["fc_b"].reshape(1).astype(jnp.float32)

    kernel = functools.partial(_soft_parser_kernel,
                               seq_len=S, batch=Bt, hidden=H)
    return pl.pallas_call(
        kernel,
        out_shape=jax.ShapeDtypeStruct((S, E), jnp.float32),
        grid=(1,),
        in_specs=[
            pl.BlockSpec((S, Bt, E), lambda i: (0, 0, 0)),        # embedded tokens (bf16)
            pl.BlockSpec((E, 8 * H), lambda i: (0, 0)),           # fused W_ih, both dirs (bf16)
            pl.BlockSpec((1, 8 * H), lambda i: (0, 0)),           # fused b_ih + b_hh (f32)
            pl.BlockSpec((2 * H, 8 * H), lambda i: (0, 0)),       # block-diag W_hh (bf16)
            pl.BlockSpec((1, 2 * H), lambda i: (0, 0)),           # attention fc weight (f32)
            pl.BlockSpec(memory_space=pltpu.MemorySpace.SMEM),    # attention fc bias (scalar)
        ],
        out_specs=pl.BlockSpec((S, E), lambda i: (0, 0)),
        scratch_shapes=[
            pltpu.VMEM((S, Bt, 8 * H), jnp.float32),   # projected + direction-selected gates
            pltpu.VMEM((S, Bt, 1), jnp.float32),       # fwd-direction attention logits
            pltpu.VMEM((S, Bt, 1), jnp.float32),       # bwd-direction attention logits
        ],
        compiler_params=pltpu.CompilerParams(
            dimension_semantics=("arbitrary",),
            vmem_limit_bytes=32 * 1024 * 1024),
    )(emb, wx, bx, whh, fcw, fcb)


# ----------------------------------------------------------------------------
# Deterministic synthetic parameters (same structure as the nn.Module)
# ----------------------------------------------------------------------------

def init_soft_parser(key, vocab, embed_dim, hidden_dim):
    keys = iter(jax.random.split(key, 16))
    nk = lambda: next(keys)
    p = {}
    tbl = 0.1 * jax.random.normal(nk(), (vocab, embed_dim), jnp.float32)
    p["embed"] = tbl.at[0].set(0.0)                         # padding_idx=0
    for d in ("f", "b"):                                    # forward / backward dirs
        p[f"w_ih_{d}"] = 0.1 * jax.random.normal(nk(), (4 * hidden_dim, embed_dim), jnp.float32)
        p[f"w_hh_{d}"] = 0.1 * jax.random.normal(nk(), (4 * hidden_dim, hidden_dim), jnp.float32)
        p[f"b_ih_{d}"] = 0.1 * jax.random.normal(nk(), (4 * hidden_dim,), jnp.float32)
        p[f"b_hh_{d}"] = 0.1 * jax.random.normal(nk(), (4 * hidden_dim,), jnp.float32)
    p["fc_w"] = 0.1 * jax.random.normal(nk(), (1, 2 * hidden_dim), jnp.float32)
    p["fc_b"] = 0.1 * jax.random.normal(nk(), (1,), jnp.float32)
    return p


# ----------------------------------------------------------------------------
# Pure-JAX f32 reference (mirrors the PyTorch module exactly) for a correctness check
# ----------------------------------------------------------------------------

def soft_parser_reference(p, tokens):
    emb = p["embed"][tokens]                                # (S, Bt, E)
    S, Bt, E = emb.shape
    H = p["w_hh_f"].shape[1]

    def run_dir(w_ih, w_hh, b_ih, b_hh, reverse):
        xs = emb[::-1] if reverse else emb

        def step(carry, x_t):
            h, c = carry
            gates = x_t @ w_ih.T + b_ih + h @ w_hh.T + b_hh
            i = jax.nn.sigmoid(gates[:, :H])
            f = jax.nn.sigmoid(gates[:, H:2 * H])
            g = jnp.tanh(gates[:, 2 * H:3 * H])
            o = jax.nn.sigmoid(gates[:, 3 * H:])
            c = f * c + i * g
            h = o * jnp.tanh(c)
            return (h, c), h

        init = (jnp.zeros((Bt, H), jnp.float32), jnp.zeros((Bt, H), jnp.float32))
        _, hs = lax.scan(step, init, xs)
        return hs[::-1] if reverse else hs

    h_f = run_dir(p["w_ih_f"], p["w_hh_f"], p["b_ih_f"], p["b_hh_f"], False)
    h_b = run_dir(p["w_ih_b"], p["w_hh_b"], p["b_ih_b"], p["b_hh_b"], True)
    lstm_out = jnp.concatenate([h_f, h_b], axis=-1)         # (S, Bt, 2H)
    logits = lstm_out @ p["fc_w"].T + p["fc_b"]             # (S, Bt, 1)
    attn = jax.nn.softmax(logits, axis=1)
    return jnp.sum(emb * attn, axis=1)                      # (S, E)


# ----------------------------------------------------------------------------

if __name__ == "__main__":
    VOCAB, EMBED, HIDDEN = 50, 32, 32
    B, T = 2, 8

    key = jax.random.PRNGKey(0)
    k_tok, k_par = jax.random.split(key)
    tokens = jax.random.randint(k_tok, (B, T), 1, VOCAB, dtype=jnp.int32)
    tokens = tokens.at[:, -2:].set(0)                       # exercise padding_idx=0

    params = init_soft_parser(k_par, VOCAB, EMBED, HIDDEN)

    fwd = jax.jit(soft_parser_forward)
    out = jax.block_until_ready(fwd(params, tokens))

    assert out.shape == (B, EMBED), out.shape
    assert bool(jnp.all(jnp.isfinite(out)))

    ref = soft_parser_reference(params, tokens)
    err = float(jnp.max(jnp.abs(out - ref)))
    # bf16 MXU operands (emb / W_ih / W_hh) with f32 accumulation vs the pure-f32
    # reference: tolerance relaxed from 2e-3 accordingly.
    assert err < 5e-3, f"max abs err vs pure-JAX reference: {err}"

    print("KERNEL_OK")
</pallas_src>

<mosaic_0001>
module attributes {stable_mosaic.version = 11 : i64} {
  func.func @_soft_parser_kernel(%arg0: i32, %arg1: memref<2x8x32xbf16, #tpu.memory_space<vmem>>, %arg2: memref<32x256xbf16, #tpu.memory_space<vmem>>, %arg3: memref<1x256xf32, #tpu.memory_space<vmem>>, %arg4: memref<64x256xbf16, #tpu.memory_space<vmem>>, %arg5: memref<1x64xf32, #tpu.memory_space<vmem>>, %arg6: memref<1xf32, #tpu.memory_space<smem>>, %arg7: memref<2x32xf32, #tpu.memory_space<vmem>>, %arg8: memref<2x8x256xf32, #tpu.memory_space<vmem>>, %arg9: memref<2x8x1xf32, #tpu.memory_space<vmem>>, %arg10: memref<2x8x1xf32, #tpu.memory_space<vmem>>) attributes {dimension_semantics = [#tpu.dimension_semantics<arbitrary>], iteration_bounds = array<i64: 1>, scalar_prefetch = 0 : i64, scratch_operands = 3 : i64, tpu.core_type = #tpu.core_type<tc>, window_params = [{pipeline_mode = #tpu.pipeline_mode<synchronous>, transform_indices = @transform_0, window_bounds = array<i64: 2, 8, 32>}, {pipeline_mode = #tpu.pipeline_mode<synchronous>, transform_indices = @transform_1, window_bounds = array<i64: 32, 256>}, {pipeline_mode = #tpu.pipeline_mode<synchronous>, transform_indices = @transform_2, window_bounds = array<i64: 1, 256>}, {pipeline_mode = #tpu.pipeline_mode<synchronous>, transform_indices = @transform_3, window_bounds = array<i64: 64, 256>}, {pipeline_mode = #tpu.pipeline_mode<synchronous>, transform_indices = @transform_4, window_bounds = array<i64: 1, 64>}, {transform_indices = @transform_5, window_bounds = array<i64: 1>}, {pipeline_mode = #tpu.pipeline_mode<synchronous>, transform_indices = @transform_6, window_bounds = array<i64: 2, 32>}]} {
    %c0 = arith.constant 0 : index
    %c0_0 = arith.constant 0 : index
    %c0_1 = arith.constant 0 : index
    %0 = vector.load %arg1[%c0, %c0_0, %c0_1] : memref<2x8x32xbf16, #tpu.memory_space<vmem>>, vector<2x8x32xbf16>
    %1 = vector.shape_cast %0 : vector<2x8x32xbf16> to vector<16x32xbf16>
    %c0_2 = arith.constant 0 : index
    %c0_3 = arith.constant 0 : index
    %2 = vector.load %arg2[%c0_2, %c0_3] : memref<32x256xbf16, #tpu.memory_space<vmem>>, vector<32x256xbf16>
    %cst = arith.constant dense<0.000000e+00> : vector<16x256xf32>
    %3 = tpu.matmul %1, %2, %cst {dimension_numbers = #tpu.dot_dimension_numbers<[1], [0], [0], [1], [0, 0, 1, 1], [], []>} : vector<16x32xbf16>, vector<32x256xbf16>, vector<16x256xf32> -> vector<16x256xf32>
    %c0_4 = arith.constant 0 : index
    %c0_5 = arith.constant 0 : index
    %4 = vector.load %arg3[%c0_4, %c0_5] : memref<1x256xf32, #tpu.memory_space<vmem>>, vector<1x256xf32>
    %5 = vector.broadcast %4 : vector<1x256xf32> to vector<16x256xf32>
    %6 = arith.addf %3, %5 : vector<16x256xf32>
    %7 = vector.shape_cast %6 : vector<16x256xf32> to vector<2x8x256xf32>
    %c0_6 = arith.constant 0 : index
    %c0_7 = arith.constant 0 : index
    %c0_8 = arith.constant 0 : index
    %8 = vector.load %arg8[%c0_6, %c0_7, %c0_8] : memref<2x8x256xf32, #tpu.memory_space<vmem>>, vector<2x8x256xf32>
    tpu.vector_store %arg8[%c0_6, %c0_7, %c0_8], %7 {strides = array<i32>} : memref<2x8x256xf32, #tpu.memory_space<vmem>>, vector<2x8x256xf32>,
    %9 = tpu.iota {dimensions = array<i32: 1>} : vector<8x256xi32>
    %c64_i32 = arith.constant 64 : i32
    %c0_i32 = arith.constant 0 : i32
    %10 = arith.cmpi eq, %c64_i32, %c0_i32 : i32
    %c1_i32 = arith.constant 1 : i32
    %11 = arith.select %10, %c1_i32, %c64_i32 : i32
    %12 = vector.broadcast %11 : i32 to vector<8x256xi32>
    %13 = arith.remsi %9, %12 : vector<8x256xi32>
    %c0_i32_9 = arith.constant 0 : i32
    %14 = vector.broadcast %c0_i32_9 : i32 to vector<8x256xi32>
    %15 = arith.cmpi ne, %13, %14 : vector<8x256xi32>
    %c0_i32_10 = arith.constant 0 : i32
    %16 = vector.broadcast %c0_i32_10 : i32 to vector<8x256xi32>
    %17 = arith.cmpi slt, %13, %16 : vector<8x256xi32>
    %c0_i32_11 = arith.constant 0 : i32
    %18 = arith.cmpi slt, %11, %c0_i32_11 : i32
    %19 = vector.broadcast %18 : i1 to vector<8x256xi1>
    %20 = vector.broadcast %19 : vector<8x256xi1> to vector<8x256xi1>
    %21 = arith.xori %17, %20 : vector<8x256xi1>
    %22 = arith.andi %21, %15 : vector<8x256xi1>
    %23 = vector.broadcast %11 : i32 to vector<8x256xi32>
    %24 = arith.addi %13, %23 : vector<8x256xi32>
    %25 = arith.select %22, %24, %13 : vector<8x256xi1>, vector<8x256xi32>
    %c32_i32 = arith.constant 32 : i32
    %26 = vector.broadcast %c32_i32 : i32 to vector<8x256xi32>
    %27 = arith.cmpi slt, %25, %26 : vector<8x256xi32>
    %c0_i32_12 = arith.constant 0 : i32
    %c1_i32_13 = arith.constant 1 : i32
    %28 = arith.subi %c1_i32_13, %c0_i32_12 : i32
    %29 = arith.index_cast %c0_i32_12 : i32 to index
    %c0_14 = arith.constant 0 : index
    %c0_15 = arith.constant 0 : index
    %30 = vector.load %arg8[%29, %c0_14, %c0_15] : memref<2x8x256xf32, #tpu.memory_space<vmem>>, vector<1x8x256xf32>
    %31 = vector.shape_cast %30 : vector<1x8x256xf32> to vector<8x256xf32>
    %32 = arith.index_cast %28 : i32 to index
    %c0_16 = arith.constant 0 : index
    %c0_17 = arith.constant 0 : index
    %33 = vector.load %arg8[%32, %c0_16, %c0_17] : memref<2x8x256xf32, #tpu.memory_space<vmem>>, vector<1x8x256xf32>
    %34 = vector.shape_cast %33 : vector<1x8x256xf32> to vector<8x256xf32>
    %35 = arith.select %27, %31, %34 : vector<8x256xi1>, vector<8x256xf32>
    %36 = arith.index_cast %c0_i32_12 : i32 to index
    %c0_18 = arith.constant 0 : index
    %c0_19 = arith.constant 0 : index
    %37 = vector.load %arg8[%36, %c0_18, %c0_19] : memref<2x8x256xf32, #tpu.memory_space<vmem>>, vector<1x8x256xf32>
    %38 = vector.shape_cast %37 : vector<1x8x256xf32> to vector<8x256xf32>
    %39 = vector.shape_cast %35 : vector<8x256xf32> to vector<1x8x256xf32>
    tpu.vector_store %arg8[%36, %c0_18, %c0_19], %39 {strides = array<i32>} : memref<2x8x256xf32, #tpu.memory_space<vmem>>, vector<1x8x256xf32>,
    %40 = arith.select %27, %34, %31 : vector<8x256xi1>, vector<8x256xf32>
    %41 = arith.index_cast %28 : i32 to index
    %c0_20 = arith.constant 0 : index
    %c0_21 = arith.constant 0 : index
    %42 = vector.load %arg8[%41, %c0_20, %c0_21] : memref<2x8x256xf32, #tpu.memory_space<vmem>>, vector<1x8x256xf32>
    %43 = vector.shape_cast %42 : vector<1x8x256xf32> to vector<8x256xf32>
    %44 = vector.shape_cast %40 : vector<8x256xf32> to vector<1x8x256xf32>
    tpu.vector_store %arg8[%41, %c0_20, %c0_21], %44 {strides = array<i32>} : memref<2x8x256xf32, #tpu.memory_space<vmem>>, vector<1x8x256xf32>,
    %c1_i32_22 = arith.constant 1 : i32
    %c0_23 = arith.constant 0 : index
    %c0_24 = arith.constant 0 : index
    %45 = vector.load %arg5[%c0_23, %c0_24] : memref<1x64xf32, #tpu.memory_space<vmem>>, vector<1x32xf32>
    %c0_25 = arith.constant 0 : index
    %c32 = arith.constant 32 : index
    %46 = vector.load %arg5[%c0_25, %c32] : memref<1x64xf32, #tpu.memory_space<vmem>>, vector<1x32xf32>
    %cst_26 = arith.constant 0.000000e+00 : f32
    %47 = vector.broadcast %cst_26 : f32 to vector<8x64xf32>
    %cst_27 = arith.constant 0.000000e+00 : f32
    %48 = vector.broadcast %cst_27 : f32 to vector<8x64xf32>
    %c0_i32_28 = arith.constant 0 : i32
    %c1_i32_29 = arith.constant 1 : i32
    %49 = arith.subi %c1_i32_29, %c0_i32_28 : i32
    %50 = arith.index_cast %c0_i32_28 : i32 to index
    %c0_30 = arith.constant 0 : index
    %c0_31 = arith.constant 0 : index
    %51 = vector.load %arg8[%50, %c0_30, %c0_31] : memref<2x8x256xf32, #tpu.memory_space<vmem>>, vector<1x8x256xf32>
    %52 = vector.shape_cast %51 : vector<1x8x256xf32> to vector<8x256xf32>
    %53 = arith.truncf %47 : vector<8x64xf32> to vector<8x64xbf16>
    %c0_32 = arith.constant 0 : index
    %c0_33 = arith.constant 0 : index
    %54 = vector.load %arg4[%c0_32, %c0_33] : memref<64x256xbf16, #tpu.memory_space<vmem>>, vector<64x256xbf16>
    %cst_34 = arith.constant dense<0.000000e+00> : vector<8x256xf32>
    %55 = tpu.matmul %53, %54, %cst_34 {dimension_numbers = #tpu.dot_dimension_numbers<[1], [0], [0], [1], [0, 0, 1, 1], [], []>} : vector<8x64xbf16>, vector<64x256xbf16>, vector<8x256xf32> -> vector<8x256xf32>
    %56 = arith.addf %52, %55 : vector<8x256xf32>
    %57 = vector.extract_strided_slice %56 {offsets = [0, 0], sizes = [8, 64], strides = [1, 1]} : vector<8x256xf32> to vector<8x64xf32>
    %58 = arith.negf %57 : vector<8x64xf32>
    %59 = math.exp %58 : vector<8x64xf32>
    %cst_35 = arith.constant 1.000000e+00 : f32
    %60 = vector.broadcast %cst_35 : f32 to vector<8x64xf32>
    %61 = arith.addf %60, %59 : vector<8x64xf32>
    %62 = arith.divf %60, %61 : vector<8x64xf32>
    %63 = vector.extract_strided_slice %56 {offsets = [0, 64], sizes = [8, 64], strides = [1, 1]} : vector<8x256xf32> to vector<8x64xf32>
    %64 = arith.negf %63 : vector<8x64xf32>
    %65 = math.exp %64 : vector<8x64xf32>
    %cst_36 = arith.constant 1.000000e+00 : f32
    %66 = vector.broadcast %cst_36 : f32 to vector<8x64xf32>
    %67 = arith.addf %66, %65 : vector<8x64xf32>
    %68 = arith.divf %66, %67 : vector<8x64xf32>
    %69 = vector.extract_strided_slice %56 {offsets = [0, 128], sizes = [8, 64], strides = [1, 1]} : vector<8x256xf32> to vector<8x64xf32>
    %70 = math.tanh %69 : vector<8x64xf32>
    %71 = vector.extract_strided_slice %56 {offsets = [0, 192], sizes = [8, 64], strides = [1, 1]} : vector<8x256xf32> to vector<8x64xf32>
    %72 = arith.negf %71 : vector<8x64xf32>
    %73 = math.exp %72 : vector<8x64xf32>
    %cst_37 = arith.constant 1.000000e+00 : f32
    %74 = vector.broadcast %cst_37 : f32 to vector<8x64xf32>
    %75 = arith.addf %74, %73 : vector<8x64xf32>
    %76 = arith.divf %74, %75 : vector<8x64xf32>
    %77 = arith.mulf %68, %48 : vector<8x64xf32>
    %78 = arith.mulf %62, %70 : vector<8x64xf32>
    %79 = arith.addf %77, %78 : vector<8x64xf32>
    %80 = math.tanh %79 : vector<8x64xf32>
    %81 = arith.mulf %76, %80 : vector<8x64xf32>
    %82 = vector.extract_strided_slice %81 {offsets = [0, 0], sizes = [8, 32], strides = [1, 1]} : vector<8x64xf32> to vector<8x32xf32>
    %83 = vector.broadcast %45 : vector<1x32xf32> to vector<8x32xf32>
    %84 = arith.mulf %82, %83 : vector<8x32xf32>
    %cst_38 = arith.constant dense<0.000000e+00> : vector<8xf32>
    %85 = vector.multi_reduction <add>, %84, %cst_38 [1] : vector<8x32xf32> to vector<8xf32>
    %86 = vector.shape_cast %85 : vector<8xf32> to vector<8x1xf32>
    %87 = arith.index_cast %c0_i32_28 : i32 to index
    %c0_39 = arith.constant 0 : index
    %c0_40 = arith.constant 0 : index
    %88 = vector.load %arg9[%87, %c0_39, %c0_40] : memref<2x8x1xf32, #tpu.memory_space<vmem>>, vector<1x8x1xf32>
    %89 = vector.shape_cast %88 : vector<1x8x1xf32> to vector<8x1xf32>
    %90 = vector.shape_cast %86 : vector<8x1xf32> to vector<1x8x1xf32>
    tpu.vector_store %arg9[%87, %c0_39, %c0_40], %90 {strides = array<i32>} : memref<2x8x1xf32, #tpu.memory_space<vmem>>, vector<1x8x1xf32>,
    %91 = vector.extract_strided_slice %81 {offsets = [0, 32], sizes = [8, 32], strides = [1, 1]} : vector<8x64xf32> to vector<8x32xf32>
    %92 = vector.broadcast %46 : vector<1x32xf32> to vector<8x32xf32>
    %93 = arith.mulf %91, %92 : vector<8x32xf32>
    %cst_41 = arith.constant dense<0.000000e+00> : vector<8xf32>
    %94 = vector.multi_reduction <add>, %93, %cst_41 [1] : vector<8x32xf32> to vector<8xf32>
    %95 = vector.shape_cast %94 : vector<8xf32> to vector<8x1xf32>
    %96 = arith.index_cast %49 : i32 to index
    %c0_42 = arith.constant 0 : index
    %c0_43 = arith.constant 0 : index
    %97 = vector.load %arg10[%96, %c0_42, %c0_43] : memref<2x8x1xf32, #tpu.memory_space<vmem>>, vector<1x8x1xf32>
    %98 = vector.shape_cast %97 : vector<1x8x1xf32> to vector<8x1xf32>
    %99 = vector.shape_cast %95 : vector<8x1xf32> to vector<1x8x1xf32>
    tpu.vector_store %arg10[%96, %c0_42, %c0_43], %99 {strides = array<i32>} : memref<2x8x1xf32, #tpu.memory_space<vmem>>, vector<1x8x1xf32>,
    %c1_i32_44 = arith.constant 1 : i32
    %c1_i32_45 = arith.constant 1 : i32
    %100 = arith.subi %c1_i32_45, %c1_i32_44 : i32
    %101 = arith.index_cast %c1_i32_44 : i32 to index
    %c0_46 = arith.constant 0 : index
    %c0_47 = arith.constant 0 : index
    %102 = vector.load %arg8[%101, %c0_46, %c0_47] : memref<2x8x256xf32, #tpu.memory_space<vmem>>, vector<1x8x256xf32>
    %103 = vector.shape_cast %102 : vector<1x8x256xf32> to vector<8x256xf32>
    %104 = arith.truncf %81 : vector<8x64xf32> to vector<8x64xbf16>
    %c0_48 = arith.constant 0 : index
    %c0_49 = arith.constant 0 : index
    %105 = vector.load %arg4[%c0_48, %c0_49] : memref<64x256xbf16, #tpu.memory_space<vmem>>, vector<64x256xbf16>
    %cst_50 = arith.constant dense<0.000000e+00> : vector<8x256xf32>
    %106 = tpu.matmul %104, %105, %cst_50 {dimension_numbers = #tpu.dot_dimension_numbers<[1], [0], [0], [1], [0, 0, 1, 1], [], []>} : vector<8x64xbf16>, vector<64x256xbf16>, vector<8x256xf32> -> vector<8x256xf32>
    %107 = arith.addf %103, %106 : vector<8x256xf32>
    %108 = vector.extract_strided_slice %107 {offsets = [0, 0], sizes = [8, 64], strides = [1, 1]} : vector<8x256xf32> to vector<8x64xf32>
    %109 = arith.negf %108 : vector<8x64xf32>
    %110 = math.exp %109 : vector<8x64xf32>
    %cst_51 = arith.constant 1.000000e+00 : f32
    %111 = vector.broadcast %cst_51 : f32 to vector<8x64xf32>
    %112 = arith.addf %111, %110 : vector<8x64xf32>
    %113 = arith.divf %111, %112 : vector<8x64xf32>
    %114 = vector.extract_strided_slice %107 {offsets = [0, 64], sizes = [8, 64], strides = [1, 1]} : vector<8x256xf32> to vector<8x64xf32>
    %115 = arith.negf %114 : vector<8x64xf32>
    %116 = math.exp %115 : vector<8x64xf32>
    %cst_52 = arith.constant 1.000000e+00 : f32
    %117 = vector.broadcast %cst_52 : f32 to vector<8x64xf32>
    %118 = arith.addf %117, %116 : vector<8x64xf32>
    %119 = arith.divf %117, %118 : vector<8x64xf32>
    %120 = vector.extract_strided_slice %107 {offsets = [0, 128], sizes = [8, 64], strides = [1, 1]} : vector<8x256xf32> to vector<8x64xf32>
    %121 = math.tanh %120 : vector<8x64xf32>
    %122 = vector.extract_strided_slice %107 {offsets = [0, 192], sizes = [8, 64], strides = [1, 1]} : vector<8x256xf32> to vector<8x64xf32>
    %123 = arith.negf %122 : vector<8x64xf32>
    %124 = math.exp %123 : vector<8x64xf32>
    %cst_53 = arith.constant 1.000000e+00 : f32
    %125 = vector.broadcast %cst_53 : f32 to vector<8x64xf32>
    %126 = arith.addf %125, %124 : vector<8x64xf32>
    %127 = arith.divf %125, %126 : vector<8x64xf32>
    %128 = arith.mulf %119, %79 : vector<8x64xf32>
    %129 = arith.mulf %113, %121 : vector<8x64xf32>
    %130 = arith.addf %128, %129 : vector<8x64xf32>
    %131 = math.tanh %130 : vector<8x64xf32>
    %132 = arith.mulf %127, %131 : vector<8x64xf32>
    %133 = vector.extract_strided_slice %132 {offsets = [0, 0], sizes = [8, 32], strides = [1, 1]} : vector<8x64xf32> to vector<8x32xf32>
    %134 = vector.broadcast %45 : vector<1x32xf32> to vector<8x32xf32>
    %135 = arith.mulf %133, %134 : vector<8x32xf32>
    %cst_54 = arith.constant dense<0.000000e+00> : vector<8xf32>
    %136 = vector.multi_reduction <add>, %135, %cst_54 [1] : vector<8x32xf32> to vector<8xf32>
    %137 = vector.shape_cast %136 : vector<8xf32> to vector<8x1xf32>
    %138 = arith.index_cast %c1_i32_44 : i32 to index
    %c0_55 = arith.constant 0 : index
    %c0_56 = arith.constant 0 : index
    %139 = vector.load %arg9[%138, %c0_55, %c0_56] : memref<2x8x1xf32, #tpu.memory_space<vmem>>, vector<1x8x1xf32>
    %140 = vector.shape_cast %139 : vector<1x8x1xf32> to vector<8x1xf32>
    %141 = vector.shape_cast %137 : vector<8x1xf32> to vector<1x8x1xf32>
    tpu.vector_store %arg9[%138, %c0_55, %c0_56], %141 {strides = array<i32>} : memref<2x8x1xf32, #tpu.memory_space<vmem>>, vector<1x8x1xf32>,
    %142 = vector.extract_strided_slice %132 {offsets = [0, 32], sizes = [8, 32], strides = [1, 1]} : vector<8x64xf32> to vector<8x32xf32>
    %143 = vector.broadcast %46 : vector<1x32xf32> to vector<8x32xf32>
    %144 = arith.mulf %142, %143 : vector<8x32xf32>
    %cst_57 = arith.constant dense<0.000000e+00> : vector<8xf32>
    %145 = vector.multi_reduction <add>, %144, %cst_57 [1] : vector<8x32xf32> to vector<8xf32>
    %146 = vector.shape_cast %145 : vector<8xf32> to vector<8x1xf32>
    %147 = arith.index_cast %100 : i32 to index
    %c0_58 = arith.constant 0 : index
    %c0_59 = arith.constant 0 : index
    %148 = vector.load %arg10[%147, %c0_58, %c0_59] : memref<2x8x1xf32, #tpu.memory_space<vmem>>, vector<1x8x1xf32>
    %149 = vector.shape_cast %148 : vector<1x8x1xf32> to vector<8x1xf32>
    %150 = vector.shape_cast %146 : vector<8x1xf32> to vector<1x8x1xf32>
    tpu.vector_store %arg10[%147, %c0_58, %c0_59], %150 {strides = array<i32>} : memref<2x8x1xf32, #tpu.memory_space<vmem>>, vector<1x8x1xf32>,
    %c2_i32 = arith.constant 2 : i32
    %c0_60 = arith.constant 0 : index
    %c0_61 = arith.constant 0 : index
    %c0_62 = arith.constant 0 : index
    %151 = vector.load %arg9[%c0_60, %c0_61, %c0_62] : memref<2x8x1xf32, #tpu.memory_space<vmem>>, vector<2x8x1xf32>
    %c0_63 = arith.constant 0 : index
    %c0_64 = arith.constant 0 : index
    %c0_65 = arith.constant 0 : index
    %152 = vector.load %arg10[%c0_63, %c0_64, %c0_65] : memref<2x8x1xf32, #tpu.memory_space<vmem>>, vector<2x8x1xf32>
    %153 = arith.addf %151, %152 : vector<2x8x1xf32>
    %c0_66 = arith.constant 0 : index
    %154 = memref.load %arg6[%c0_66] : memref<1xf32, #tpu.memory_space<smem>>
    %155 = vector.broadcast %154 : f32 to vector<2x8x1xf32>
    %156 = arith.addf %153, %155 : vector<2x8x1xf32>
    %cst_67 = arith.constant dense<0xFF800000> : vector<2x1xf32>
    %157 = vector.multi_reduction <maximumf>, %156, %cst_67 [1] : vector<2x8x1xf32> to vector<2x1xf32>
    %158 = vector.shape_cast %157 : vector<2x1xf32> to vector<2x1x1xf32>
    %159 = vector.broadcast %158 : vector<2x1x1xf32> to vector<2x8x1xf32>
    %160 = arith.subf %156, %159 : vector<2x8x1xf32>
    %161 = math.exp %160 : vector<2x8x1xf32>
    %cst_68 = arith.constant dense<0.000000e+00> : vector<2x1xf32>
    %162 = vector.multi_reduction <add>, %161, %cst_68 [1] : vector<2x8x1xf32> to vector<2x1xf32>
    %163 = vector.shape_cast %162 : vector<2x1xf32> to vector<2x1x1xf32>
    %164 = tpu.reciprocal %163 {approx = true} : vector<2x1x1xf32> -> vector<2x1x1xf32>
    %165 = vector.broadcast %164 : vector<2x1x1xf32> to vector<2x8x1xf32>
    %166 = arith.mulf %161, %165 : vector<2x8x1xf32>
    %167 = arith.extf %0 : vector<2x8x32xbf16> to vector<2x8x32xf32>
    %168 = vector.broadcast %166 : vector<2x8x1xf32> to vector<2x8x32xf32>
    %169 = arith.mulf %167, %168 : vector<2x8x32xf32>
    %cst_69 = arith.constant dense<0.000000e+00> : vector<2x32xf32>
    %170 = vector.multi_reduction <add>, %169, %cst_69 [1] : vector<2x8x32xf32> to vector<2x32xf32>
    %c0_70 = arith.constant 0 : index
    %c0_71 = arith.constant 0 : index
    %171 = vector.load %arg7[%c0_70, %c0_71] : memref<2x32xf32, #tpu.memory_space<vmem>>, vector<2x32xf32>
    tpu.vector_store %arg7[%c0_70, %c0_71], %170 {strides = array<i32>} : memref<2x32xf32, #tpu.memory_space<vmem>>, vector<2x32xf32>,
    return
  }
  func.func @transform_0(%arg0: i32) -> (i32, i32, i32) {
    %c0_i32 = arith.constant 0 : i32
    %c0_i32_0 = arith.constant 0 : i32
    %c0_i32_1 = arith.constant 0 : i32
    %c0_i32_2 = arith.constant 0 : i32
    return %c0_i32, %c0_i32_0, %c0_i32_1 : i32, i32, i32
  }
  func.func @transform_1(%arg0: i32) -> (i32, i32) {
    %c0_i32 = arith.constant 0 : i32
    %c0_i32_0 = arith.constant 0 : i32
    %c0_i32_1 = arith.constant 0 : i32
    return %c0_i32, %c0_i32_0 : i32, i32
  }
  func.func @transform_2(%arg0: i32) -> (i32, i32) {
    %c0_i32 = arith.constant 0 : i32
    %c0_i32_0 = arith.constant 0 : i32
    %c0_i32_1 = arith.constant 0 : i32
    return %c0_i32, %c0_i32_0 : i32, i32
  }
  func.func @transform_3(%arg0: i32) -> (i32, i32) {
    %c0_i32 = arith.constant 0 : i32
    %c0_i32_0 = arith.constant 0 : i32
    %c0_i32_1 = arith.constant 0 : i32
    return %c0_i32, %c0_i32_0 : i32, i32
  }
  func.func @transform_4(%arg0: i32) -> (i32, i32) {
    %c0_i32 = arith.constant 0 : i32
    %c0_i32_0 = arith.constant 0 : i32
    %c0_i32_1 = arith.constant 0 : i32
    return %c0_i32, %c0_i32_0 : i32, i32
  }
  func.func @transform_5(%arg0: i32) -> i32 {
    %c0_i32 = arith.constant 0 : i32
    %c0_i32_0 = arith.constant 0 : i32
    return %c0_i32 : i32
  }
  func.func @transform_6(%arg0: i32) -> (i32, i32) {
    %c0_i32 = arith.constant 0 : i32
    %c0_i32_0 = arith.constant 0 : i32
    %c0_i32_1 = arith.constant 0 : i32
    return %c0_i32, %c0_i32_0 : i32, i32
  }
}

</mosaic_0001>

<llo_original>
// kernel: soft_parser_forward.1
$region0: #{soft_parser_forward.1}
  #allocation0 [shape = 'u32[]', space=smem, size = 0x4, offset = 0x4, fixed_abs, tag = 'smem constant byte address 0x4 - core index']
  #allocation1 [shape = 'u32[144,128]{1,0:T(1,128)}', space=vmem, size = 0x12000, scoped, tag = 'internal scratch']
  #allocation2 [shape = 'f32[2,8,256]{2,1,0:T(8,128)}', space=vmem, size = 0x4000, scoped, tag = 'scratch operand']
  #allocation3 [shape = 'f32[2,8,1]{2,1,0:T(8,128)}', space=vmem, size = 0x2000, scoped, tag = 'scratch operand']
  #allocation4 [shape = 'f32[2,8,1]{2,1,0:T(8,128)}', space=vmem, size = 0x2000, scoped, tag = 'scratch operand']
  #allocation5 [shape = 'f32[1]{0:T(128)S(6)}', space=smem, size = 0x200, scoped, tag = 'scoped memory for soft_parser_forward.1']
  %s0 = inlined_call_operand.vmem [shape: bf16[2,8,32], index: 0, kind: input, shape index: {}]
  %s1 = inlined_call_operand.vmem [shape: bf16[32,256], index: 1, kind: input, shape index: {}]
  %s2 = inlined_call_operand.vmem [shape: f32[1,256], index: 2, kind: input, shape index: {}]
  %s3 = inlined_call_operand.vmem [shape: bf16[64,256], index: 3, kind: input, shape index: {}]
  %s4 = inlined_call_operand.vmem [shape: f32[1,64], index: 4, kind: input, shape index: {}]
  %s5 = inlined_call_operand.<no memory space> [shape: f32[1], index: 5, kind: input, shape index: {}]
  %s6 = inlined_call_operand.hbm [shape: f32[2,32], index: 6, kind: output, shape index: {}]
  %s7 = sld [smem:[#allocation0]]
  $region34: #{soft_parser_forward.1} parent=0
    _
  %s9 = ssub.s32 1, %s7
  %s10 = scalar_select 0, %s9, %s7
  %11 = sst [smem:[#allocation5]] %s5
  $region1: #{soft_parser_forward.1} parent=0
    #allocation6 [shape = 'u8[1024]{0}', space=vmem, size = 0x400, scoped, tag = 'output window, operand 0, single buffered']
    #allocation7 [shape = 's32[1]{0}', space=sflag, size = 0x4, scoped, tag = 'scoped memory for soft_parser_forward.1']
    %12 = vsyncpa [#allocation7], 0
    // Predicated region
    $region2: #{soft_parser_forward.1} parent=1 // pred_check
      _
    $region3: #{soft_parser_forward.1} parent=1 // pred_check_branch
      %14 = sbr.rel (0) target = $region5
    $region4: #{soft_parser_forward.1} parent=1 // pred_region
      _
    $region5: #{soft_parser_forward.1} parent=1 // pred_fallthru
      _
    // Predicated region
    $region6: #{soft_parser_forward.1} parent=1 // pred_check
      _
    $region7: #{soft_parser_forward.1} parent=1 // pred_check_branch
      %16 = sbr.rel (0) target = $region9
    $region8: #{soft_parser_forward.1} parent=1 // pred_region
      _
    $region9: #{soft_parser_forward.1} parent=1 // pred_fallthru
      _
    // Predicated region
    $region10: #{soft_parser_forward.1} parent=1 // pred_check
      _
    $region11: #{soft_parser_forward.1} parent=1 // pred_check_branch
      %18 = sbr.rel (0) target = $region13
    $region12: #{soft_parser_forward.1} parent=1 // pred_region
      _
    $region13: #{soft_parser_forward.1} parent=1 // pred_fallthru
      _
    // Predicated region
    $region14: #{soft_parser_forward.1} parent=1 // pred_check
      _
    $region15: #{soft_parser_forward.1} parent=1 // pred_check_branch
      %20 = sbr.rel (0) target = $region17
    $region16: #{soft_parser_forward.1} parent=1 // pred_region
      _
    $region17: #{soft_parser_forward.1} parent=1 // pred_fallthru
      _
    // Predicated region
    $region18: #{soft_parser_forward.1} parent=1 // pred_check
      _
    $region19: #{soft_parser_forward.1} parent=1 // pred_check_branch
      %22 = sbr.rel (0) target = $region21
    $region20: #{soft_parser_forward.1} parent=1 // pred_region
      _
    $region21: #{soft_parser_forward.1} parent=1 // pred_fallthru
      _
    // Predicated region
    $region22: #{soft_parser_forward.1} parent=1 // pred_check
      _
    $region23: #{soft_parser_forward.1} parent=1 // pred_check_branch
      %24 = sbr.rel (0) target = $region25
    $region24: #{soft_parser_forward.1} parent=1 // pred_region
      _
    $region25: #{soft_parser_forward.1} parent=1 // pred_fallthru
      _
    %v26 = vld [vmem:[%s0] sm:$0xf]
    %v27 = vld [vmem:[%s0 + $0x4] sm:$0xf]
    %v28 = vld [vmem:[%s1] sm:$0xff]
    %v29 = vld [vmem:[%s1 + $0x8] sm:$0xff]
    %v30 = vld [vmem:[%s1 + $0x10] sm:$0xff]
    %v31 = vld [vmem:[%s1 + $0x18] sm:$0xff]
    %v32 = vld [vmem:[%s2] sm:$0x3]
    %v34 = vlaneseq
    %v35 = vshrl.u32 %v34, 7
    %v36 = vsub.s32 0, %v35
    %v37 = vrot.slane %v32, %v36
    %v38 = vlaneseq
    %v39 = vshrl.u32 %v38, 7
    %v40 = vsub.s32 1, %v39
    %v41 = vrot.slane %v32, %v40
    %v46 = vunpack.c.l.b16 %v26
    %v47 = vunpack.c.l.b16 %v27
    %v48 = vpack.c.b16 %v47, %v46
    %v53 = vunpack.c.l.b16 %v28
    %v54 = vunpack.c.h.b16 %v28
    %v55 = vunpack.c.l.b16 %v29
    %v56 = vunpack.c.h.b16 %v29
    %v57 = vunpack.c.l.b16 %v30
    %v58 = vunpack.c.h.b16 %v30
    %v59 = vunpack.c.l.b16 %v31
    %v60 = vunpack.c.h.b16 %v31
    %v61 = vpack.c.b16 %v55, %v53
    %v62 = vpack.c.b16 %v56, %v54
    %v63 = vpack.c.b16 %v59, %v57
    %v64 = vpack.c.b16 %v60, %v58
    %vm69 = vcmask 261120
    %v71 = vsel %vm69, %v48, 0
    %73 = vmatprep.subr.bf16.mxu0 %v62
    %74 = vmatpush1.bf16.msra.mxu0 %v61
    %75 = vmatprep.subr.bf16.mxu0 %v64
    %76 = vmatpush1.bf16.msra.mxu0 %v63
    %77 = vmatprep.subr.bf16.mxu0 0
    %78 = vmatpush1.bf16.msra.mxu0 0
    %79 = vmatprep.subr.bf16.mxu0 0
    %80 = vmatpush1.bf16.msra.mxu0 0
    %81 = vmatprep.subr.bf16.mxu0 0
    %82 = vmatpush1.bf16.msra.mxu0 0
    %83 = vmatprep.subr.bf16.mxu0 0
    %84 = vmatpush1.bf16.msra.mxu0 0
    %85 = vmatprep.subr.bf16.mxu0 0
    %86 = vmatpush1.bf16.msra.mxu0 0
    %87 = vmatprep.subr.bf16.mxu0 0
    %88 = vmatpush1.bf16.msra.mxu0 0
    %89 = vmatprep.subr.bf16.mxu0 0
    %90 = vmatpush1.bf16.msra.mxu0 0
    %91 = vmatprep.subr.bf16.mxu0 0
    %92 = vmatpush1.bf16.msra.mxu0 0
    %93 = vmatprep.subr.bf16.mxu0 0
    %94 = vmatpush1.bf16.msra.mxu0 0
    %95 = vmatprep.subr.bf16.mxu0 0
    %96 = vmatpush1.bf16.msra.mxu0 0
    %97 = vmatprep.subr.bf16.mxu0 0
    %98 = vmatpush1.bf16.msra.mxu0 0
    %99 = vmatprep.subr.bf16.mxu0 0
    %100 = vmatpush1.bf16.msra.mxu0 0
    %101 = vmatprep.subr.bf16.mxu0 0
    %102 = vmatpush1.bf16.msra.mxu0 0
    %103 = vmatprep.subr.bf16.mxu0 0
    %104 = vmatpush1.bf16.msra.mxu0 0
    %105 = vmatprep.mubr.bf16.mxu0 0
    %106 = vmatmul.mubr.bf16.gmra.mrb[0].mxu0 %v71
    %v107 = vpop.f32.mrb[0].mxu0
    %v108 = vadd.f32 %v37, %v107
    %v109 = vpop.f32.mrb[0].mxu0
    %v110 = vadd.f32 %v41, %v109
    %v111 = vpop.f32.mrb[0].mxu0
    %v112 = vadd.f32 %v37, %v111
    %v113 = vpop.f32.mrb[0].mxu0
    %v114 = vadd.f32 %v41, %v113
    %115 = vdwg.mxu0
    %116 = vst [vmem:[#allocation2] sm:$0xff] %v108
    %117 = vst [vmem:[#allocation2 + $0x8] sm:$0xff] %v110
    %118 = vst [vmem:[#allocation2 + $0x10] sm:$0xff] %v112
    %119 = vst [vmem:[#allocation2 + $0x18] sm:$0xff] %v114
    %v120 = vlaneseq
    %v121 = vand.u32 %v120, 127
    %v122 = vadd.s32 %v121, 128
    %vm123 = vcmp.lt.s32.totalorder %v121, 0
    %v124 = vsub.s32 0, %v121
    %v125 = vsel %vm123, %v124, %v121
    %v126 = vshrl.u32 %v125, 6
    %v127 = vand.u32 %v125, 63
    %v128 = vsub.s32 0, %v127
    %v129 = vsel %vm123, %v128, %v127
    %vm130 = vcmp.lt.s32.totalorder %v122, 0
    %v131 = vsub.s32 0, %v122
    %v132 = vsel %vm130, %v131, %v122
    %v133 = vshrl.u32 %v132, 6
    %v134 = vand.u32 %v132, 63
    %v135 = vsub.s32 0, %v134
    %v136 = vsel %vm130, %v135, %v134
    %vm137 = vcmp.ne.s32.totalorder %v129, 0
    %vm138 = vcmp.ne.s32.totalorder %v136, 0
    %vm139 = vcmp.lt.s32.totalorder %v129, 0
    %vm140 = vcmp.lt.s32.totalorder %v136, 0
    %vm141 = vmand %vm139, %vm137
    %vm142 = vmand %vm140, %vm138
    %v143 = vadd.s32 %v129, 64
    %v144 = vadd.s32 %v136, 64
    %v145 = vsel %vm141, %v143, %v129
    %v146 = vsel %vm142, %v144, %v136
    %vm147 = vcmp.lt.s32.totalorder %v145, 32
    %vm148 = vcmp.lt.s32.totalorder %v146, 32
    %v149 = vld [vmem:[#allocation2] sm:$0xff]
    %v150 = vld [vmem:[#allocation2 + $0x8] sm:$0xff]
    %s151 = scalar_lea.vmem [#allocation2], 16
    %v152 = vld [vmem:[%s151] sm:$0xff]
    %v153 = vld [vmem:[%s151 + $0x8] sm:$0xff]
    %v154 = vsel %vm147, %v149, %v152
    %v155 = vsel %vm148, %v150, %v153
    %156 = vst [vmem:[#allocation2] sm:$0xff] %v154
    %157 = vst [vmem:[#allocation2 + $0x8] sm:$0xff] %v155
    %v158 = vsel %vm147, %v152, %v149
    %v159 = vsel %vm148, %v153, %v150
    %160 = vst [vmem:[%s151] sm:$0xff] %v158
    %161 = vst [vmem:[%s151 + $0x8] sm:$0xff] %v159
    %v162 = vld [vmem:[%s4] sm:$0x1]
    %v163 = vld [vmem:[#allocation2] sm:$0xff]
    %v164 = vld [vmem:[#allocation2 + $0x8] sm:$0xff]
    %v165 = vld [vmem:[%s3] sm:$0xff]
    %v166 = vld [vmem:[%s3 + $0x8] sm:$0xff]
    %v167 = vld [vmem:[%s3 + $0x10] sm:$0xff]
    %v168 = vld [vmem:[%s3 + $0x18] sm:$0xff]
    %v169 = vld [vmem:[%s3 + $0x20] sm:$0xff]
    %v170 = vld [vmem:[%s3 + $0x28] sm:$0xff]
    %v171 = vld [vmem:[%s3 + $0x30] sm:$0xff]
    %v172 = vld [vmem:[%s3 + $0x38] sm:$0xff]
    %v181 = vunpack.c.l.b16 %v165
    %v182 = vunpack.c.h.b16 %v165
    %v183 = vunpack.c.l.b16 %v166
    %v184 = vunpack.c.h.b16 %v166
    %v185 = vunpack.c.l.b16 %v167
    %v186 = vunpack.c.h.b16 %v167
    %v187 = vunpack.c.l.b16 %v168
    %v188 = vunpack.c.h.b16 %v168
    %v189 = vunpack.c.l.b16 %v169
    %v190 = vunpack.c.h.b16 %v169
    %v191 = vunpack.c.l.b16 %v170
    %v192 = vunpack.c.h.b16 %v170
    %v193 = vunpack.c.l.b16 %v171
    %v194 = vunpack.c.h.b16 %v171
    %v195 = vunpack.c.l.b16 %v172
    %v196 = vunpack.c.h.b16 %v172
    %v197 = vpack.c.b16 %v183, %v181
    %v198 = vpack.c.b16 %v184, %v182
    %v199 = vpack.c.b16 %v187, %v185
    %v200 = vpack.c.b16 %v188, %v186
    %v201 = vpack.c.b16 %v191, %v189
    %v202 = vpack.c.b16 %v192, %v190
    %v203 = vpack.c.b16 %v195, %v193
    %v204 = vpack.c.b16 %v196, %v194
    %vm213 = vcmask 523264
    %v215 = vsel %vm213, 0, 0
    %217 = vmatprep.subr.bf16.mxu0 %v198
    %218 = vmatpush1.bf16.msra.mxu0 %v197
    %219 = vmatprep.subr.bf16.mxu0 %v200
    %220 = vmatpush1.bf16.msra.mxu0 %v199
    %221 = vmatprep.subr.bf16.mxu0 %v202
    %222 = vmatpush1.bf16.msra.mxu0 %v201
    %223 = vmatprep.subr.bf16.mxu0 %v204
    %224 = vmatpush1.bf16.msra.mxu0 %v203
    %225 = vmatprep.subr.bf16.mxu0 0
    %226 = vmatpush1.bf16.msra.mxu0 0
    %227 = vmatprep.subr.bf16.mxu0 0
    %228 = vmatpush1.bf16.msra.mxu0 0
    %229 = vmatprep.subr.bf16.mxu0 0
    %230 = vmatpush1.bf16.msra.mxu0 0
    %231 = vmatprep.subr.bf16.mxu0 0
    %232 = vmatpush1.bf16.msra.mxu0 0
    %233 = vmatprep.subr.bf16.mxu0 0
    %234 = vmatpush1.bf16.msra.mxu0 0
    %235 = vmatprep.subr.bf16.mxu0 0
    %236 = vmatpush1.bf16.msra.mxu0 0
    %237 = vmatprep.subr.bf16.mxu0 0
    %238 = vmatpush1.bf16.msra.mxu0 0
    %239 = vmatprep.subr.bf16.mxu0 0
    %240 = vmatpush1.bf16.msra.mxu0 0
    %241 = vmatprep.subr.bf16.mxu0 0
    %242 = vmatpush1.bf16.msra.mxu0 0
    %243 = vmatprep.subr.bf16.mxu0 0
    %244 = vmatpush1.bf16.msra.mxu0 0
    %245 = vmatprep.subr.bf16.mxu0 0
    %246 = vmatpush1.bf16.msra.mxu0 0
    %247 = vmatprep.subr.bf16.mxu0 0
    %248 = vmatpush1.bf16.msra.mxu0 0
    %249 = vmatprep.mubr.bf16.mxu0 0
    %250 = vmatmul.mubr.bf16.gmra.mrb[0].mxu0 %v215
    %v251 = vpop.f32.mrb[0].mxu0
    %v252 = vadd.f32 0.0, %v251
    %v253 = vpop.f32.mrb[0].mxu0
    %v254 = vadd.f32 0.0, %v253
    %v255 = vpop.f32.mrb[0].mxu0
    %v256 = vpop.f32.mrb[0].mxu0
    %257 = vdwg.mxu0
    %v258 = vadd.f32 %v163, %v252
    %v259 = vadd.f32 %v164, %v254
    %v260 = vxor.u32 %v258, 2147483648
    %v261 = vmul.f32 %v260, 1.442695
    %v262 = vpow.pop %v261
    %v263 = vadd.f32 %v262, 1.0
    %v264 = vrcp.pop %v263
    %v265 = vmul.f32 1.0, %v264
    %v266 = vtanh.pop %v259
    %v267 = vxor.u32 %v259, 2147483648
    %v268 = vmul.f32 %v267, 1.442695
    %v269 = vpow.pop %v268
    %v270 = vadd.f32 %v269, 1.0
    %v271 = vrcp.pop %v270
    %v272 = vmul.f32 1.0, %v271
    %v273 = vmul.f32 %v265, 0.0
    %v274 = vmul.f32 %v265, %v266
    %276 = vrot.lane.b32.xlu0 %v274, 64
    %v277 = vpop.permute.xlu0 %276
    %v279 = vadd.f32 %v273, %v277
    %v280 = vtanh.pop %v279
    %v281 = vmul.f32 %v272, %v280
    %v283 = vlaneseq
    %v284 = vshrl.u32 %v283, 7
    %v285 = vsub.s32 0, %v284
    %v286 = vrot.slane %v162, %v285
    %287 = vrot.lane.b32.xlu0 %v286, 64
    %v288 = vpop.permute.xlu0 %287
    %v290 = vmul.f32 %v281, %v288
    %292 = vrot.lane.b32.xlu0 %v290, 64
    %v293 = vpop.permute.xlu0 %292
    %v295 = vsel %vm69, %v293, 0.0
    %296 = vadd.xlane.f32.xlu0 %v295
    %v297 = vpop.xlane.xlu0 %296
    %vm298 = vcmask 7168
    %299 = vst.msk [vmem:[#allocation3] sm:$0xff] %vm298, %v297
    %300 = vrot.lane.b32.xlu0 %v290, 32
    %v301 = vpop.permute.xlu0 %300
    %v303 = vsel %vm69, %v301, 0.0
    %304 = vadd.xlane.f32.xlu0 %v303
    %v305 = vpop.xlane.xlu0 %304
    %s306 = scalar_lea.vmem [#allocation4], 8
    %307 = vst.msk [vmem:[%s306] sm:$0xff] %vm298, %v305
    %v308 = vld [vmem:[%s151] sm:$0xff]
    %v309 = vld [vmem:[%s151 + $0x8] sm:$0xff]
    %v310 = vpack.c.bf16 %v281, %v281
    %v311 = vld [vmem:[%s3] sm:$0xff]
    %v312 = vld [vmem:[%s3 + $0x8] sm:$0xff]
    %v313 = vld [vmem:[%s3 + $0x10] sm:$0xff]
    %v314 = vld [vmem:[%s3 + $0x18] sm:$0xff]
    %v315 = vld [vmem:[%s3 + $0x20] sm:$0xff]
    %v316 = vld [vmem:[%s3 + $0x28] sm:$0xff]
    %v317 = vld [vmem:[%s3 + $0x30] sm:$0xff]
    %v318 = vld [vmem:[%s3 + $0x38] sm:$0xff]
    %320 = vrot.lane.b32.xlu0 %v310, 64
    %v321 = vpop.permute.xlu0 %320
    %v330 = vunpack.c.l.b16 %v311
    %v331 = vunpack.c.h.b16 %v311
    %v332 = vunpack.c.l.b16 %v312
    %v333 = vunpack.c.h.b16 %v312
    %v334 = vunpack.c.l.b16 %v313
    %v335 = vunpack.c.h.b16 %v313
    %v336 = vunpack.c.l.b16 %v314
    %v337 = vunpack.c.h.b16 %v314
    %v338 = vunpack.c.l.b16 %v315
    %v339 = vunpack.c.h.b16 %v315
    %v340 = vunpack.c.l.b16 %v316
    %v341 = vunpack.c.h.b16 %v316
    %v342 = vunpack.c.l.b16 %v317
    %v343 = vunpack.c.h.b16 %v317
    %v344 = vunpack.c.l.b16 %v318
    %v345 = vunpack.c.h.b16 %v318
    %v346 = vpack.c.b16 %v332, %v330
    %v347 = vpack.c.b16 %v333, %v331
    %v348 = vpack.c.b16 %v336, %v334
    %v349 = vpack.c.b16 %v337, %v335
    %v350 = vpack.c.b16 %v340, %v338
    %v351 = vpack.c.b16 %v341, %v339
    %v352 = vpack.c.b16 %v344, %v342
    %v353 = vpack.c.b16 %v345, %v343
    %v363 = vsel %vm213, %v321, 0
    %365 = vmatprep.subr.bf16.mxu0 %v347
    %366 = vmatpush1.bf16.msra.mxu0 %v346
    %367 = vmatprep.subr.bf16.mxu0 %v349
    %368 = vmatpush1.bf16.msra.mxu0 %v348
    %369 = vmatprep.subr.bf16.mxu0 %v351
    %370 = vmatpush1.bf16.msra.mxu0 %v350
    %371 = vmatprep.subr.bf16.mxu0 %v353
    %372 = vmatpush1.bf16.msra.mxu0 %v352
    %373 = vmatprep.subr.bf16.mxu0 0
    %374 = vmatpush1.bf16.msra.mxu0 0
    %375 = vmatprep.subr.bf16.mxu0 0
    %376 = vmatpush1.bf16.msra.mxu0 0
    %377 = vmatprep.subr.bf16.mxu0 0
    %378 = vmatpush1.bf16.msra.mxu0 0
    %379 = vmatprep.subr.bf16.mxu0 0
    %380 = vmatpush1.bf16.msra.mxu0 0
    %381 = vmatprep.subr.bf16.mxu0 0
    %382 = vmatpush1.bf16.msra.mxu0 0
    %383 = vmatprep.subr.bf16.mxu0 0
    %384 = vmatpush1.bf16.msra.mxu0 0
    %385 = vmatprep.subr.bf16.mxu0 0
    %386 = vmatpush1.bf16.msra.mxu0 0
    %387 = vmatprep.subr.bf16.mxu0 0
    %388 = vmatpush1.bf16.msra.mxu0 0
    %389 = vmatprep.subr.bf16.mxu0 0
    %390 = vmatpush1.bf16.msra.mxu0 0
    %391 = vmatprep.subr.bf16.mxu0 0
    %392 = vmatpush1.bf16.msra.mxu0 0
    %393 = vmatprep.subr.bf16.mxu0 0
    %394 = vmatpush1.bf16.msra.mxu0 0
    %395 = vmatprep.subr.bf16.mxu0 0
    %396 = vmatpush1.bf16.msra.mxu0 0
    %397 = vmatprep.mubr.bf16.mxu0 0
    %398 = vmatmul.mubr.bf16.gmra.mrb[0].mxu0 %v363
    %v399 = vpop.f32.mrb[0].mxu0
    %v400 = vadd.f32 0.0, %v399
    %v401 = vpop.f32.mrb[0].mxu0
    %v402 = vadd.f32 0.0, %v401
    %v403 = vpop.f32.mrb[0].mxu0
    %v404 = vpop.f32.mrb[0].mxu0
    %405 = vdwg.mxu0
    %v406 = vadd.f32 %v308, %v400
    %v407 = vadd.f32 %v309, %v402
    %v408 = vxor.u32 %v406, 2147483648
    %v409 = vmul.f32 %v408, 1.442695
    %v410 = vpow.pop %v409
    %v411 = vadd.f32 %v410, 1.0
    %v412 = vrcp.pop %v411
    %v413 = vmul.f32 1.0, %v412
    %v414 = vtanh.pop %v407
    %v415 = vxor.u32 %v407, 2147483648
    %v416 = vmul.f32 %v415, 1.442695
    %v417 = vpow.pop %v416
    %v418 = vadd.f32 %v417, 1.0
    %v419 = vrcp.pop %v418
    %v420 = vmul.f32 1.0, %v419
    %v421 = vmul.f32 %v413, %v279
    %v422 = vmul.f32 %v413, %v414
    %424 = vrot.lane.b32.xlu0 %v422, 64
    %v425 = vpop.permute.xlu0 %424
    %v427 = vadd.f32 %v421, %v425
    %v428 = vtanh.pop %v427
    %v429 = vmul.f32 %v420, %v428
    %v430 = vmul.f32 %v429, %v288
    %432 = vrot.lane.b32.xlu0 %v430, 64
    %v433 = vpop.permute.xlu0 %432
    %v435 = vsel %vm69, %v433, 0.0
    %436 = vadd.xlane.f32.xlu0 %v435
    %v437 = vpop.xlane.xlu0 %436
    %s438 = scalar_lea.vmem [#allocation3], 8
    %439 = vst.msk [vmem:[%s438] sm:$0xff] %vm298, %v437
    %440 = vrot.lane.b32.xlu0 %v430, 32
    %v441 = vpop.permute.xlu0 %440
    %v443 = vsel %vm69, %v441, 0.0
    %444 = vadd.xlane.f32.xlu0 %v443
    %v445 = vpop.xlane.xlu0 %444
    %446 = vst.msk [vmem:[#allocation4] sm:$0xff] %vm298, %v445
    %v447 = vld [vmem:[#allocation3] sm:$0xff]
    %v448 = vld [vmem:[#allocation3 + $0x8] sm:$0xff]
    %v449 = vld [vmem:[#allocation4] sm:$0xff]
    %v450 = vld [vmem:[#allocation4 + $0x8] sm:$0xff]
    %v451 = vadd.f32 %v447, %v449
    %v452 = vadd.f32 %v448, %v450
    %s453 = sld [smem:[#allocation5]]
    %v454 = vstv %s453
    %v455 = vadd.f32 %v451, %v454
    %v456 = vadd.f32 %v452, %v454
    %v457 = vsel %vm298, %v455, -inf
    %v458 = vrot.slane %v457, 4
    %v459 = vmax.f32 %v457, %v458
    %v460 = vrot.slane %v459, 2
    %v461 = vmax.f32 %v459, %v460
    %v462 = vrot.slane %v461, 1
    %v463 = vmax.f32 %v461, %v462
    %v464 = vsel %vm298, %v456, -inf
    %v465 = vrot.slane %v464, 4
    %v466 = vmax.f32 %v464, %v465
    %v467 = vrot.slane %v466, 2
    %v468 = vmax.f32 %v466, %v467
    %v469 = vrot.slane %v468, 1
    %v470 = vmax.f32 %v468, %v469
    %v471 = vsub.f32 %v455, %v463
    %v472 = vsub.f32 %v456, %v470
    %v473 = vmul.f32 %v471, 1.442695
    %v474 = vpow.pop %v473
    %v475 = vmul.f32 %v472, 1.442695
    %v476 = vpow.pop %v475
    %v477 = vsel %vm298, %v474, 0.0
    %v478 = vrot.slane %v477, 4
    %v479 = vadd.f32 %v477, %v478
    %v480 = vrot.slane %v479, 2
    %v481 = vadd.f32 %v479, %v480
    %v482 = vrot.slane %v481, 1
    %v483 = vadd.f32 %v481, %v482
    %v484 = vsel %vm298, %v476, 0.0
    %v485 = vrot.slane %v484, 4
    %v486 = vadd.f32 %v484, %v485
    %v487 = vrot.slane %v486, 2
    %v488 = vadd.f32 %v486, %v487
    %v489 = vrot.slane %v488, 1
    %v490 = vadd.f32 %v488, %v489
    %v491 = vrcp.pop %v483
    %v492 = vrcp.pop %v490
    %v493 = vmul.f32 %v474, %v491
    %v494 = vmul.f32 %v476, %v492
    %v495 = vunpack.c.l.bf16 %v26
    %v496 = vunpack.c.l.bf16 %v27
    %498 = vset.pattern.permute.xlu0 0
    %499 = vperm.xlu0 %498, %v493
    %v500 = vpop.permute.xlu0 %499
    %503 = vset.pattern.permute.xlu0 0
    %504 = vperm.xlu0 %503, %v494
    %v505 = vpop.permute.xlu0 %504
    %v507 = vmul.f32 %v495, %v500
    %v508 = vmul.f32 %v496, %v505
    %v509 = vsel %vm69, %v507, 0.0
    %v510 = vrot.slane %v509, 4
    %v511 = vadd.f32 %v509, %v510
    %v512 = vrot.slane %v511, 2
    %v513 = vadd.f32 %v511, %v512
    %v514 = vrot.slane %v513, 1
    %v515 = vadd.f32 %v513, %v514
    %v516 = vsel %vm69, %v508, 0.0
    %v517 = vrot.slane %v516, 4
    %v518 = vadd.f32 %v516, %v517
    %v519 = vrot.slane %v518, 2
    %v520 = vadd.f32 %v518, %v519
    %v521 = vrot.slane %v520, 1
    %v522 = vadd.f32 %v520, %v521
    %vm525 = vcmask 1041409
    %v526 = vsel %vm525, %v522, %v515
    %vm528 = vcmask 254976
    %529 = vst.msk [vmem:[#allocation6] sm:$0x3] %vm528, %v526
    // Predicated region
    $region26: #{soft_parser_forward.1} parent=1 // pred_check
      _
    $region27: #{soft_parser_forward.1} parent=1 // pred_check_branch
      %531 = sbr.rel (0) target = $region29
    $region28: #{soft_parser_forward.1} parent=1 // pred_region
      %s533 = ssub.s32 32, 32
      %534 = vsyncadd [#allocation7], %s533
      %s536 = sshll.u32 [#allocation6], 4
      %s537 = int_to_ptr.vmem [resolvable:$true] %s536
      %539 = dma.vmem_to_hbm [thread:$0]  %s537, 32, %s6, [#allocation7]
    $region29: #{soft_parser_forward.1} parent=1 // pred_fallthru
      _
    // Predicated region
    $region30: #{soft_parser_forward.1} parent=1 // pred_check
      _
    $region31: #{soft_parser_forward.1} parent=1 // pred_check_branch
      %541 = sbr.rel (0) target = $region33
    $region32: #{soft_parser_forward.1} parent=1 // pred_region
      %542 = dma.done [#allocation7], 32
    $region33: #{soft_parser_forward.1} parent=1 // pred_fallthru
      _
    %543 = vsyncpa [#allocation7], 1

</llo_original>
